<compile_context>
chip_gen: v6e
topology: v6e:2x2x1
jax: 0.10.0
libtpu: 0.0.40
codegen_flags: <defaults>
</compile_context>

<pallas_src>
import functools

import jax
import jax.numpy as jnp
from jax import lax
from jax.experimental import pallas as pl
from jax.experimental.pallas import tpu as pltpu


_UNROLL_MAX = 8  # static-unroll threshold for the 128-lane chunk loop


def _cos_loss_kernel(s_ref, t_ref, dum_ref, out_ref,
                     dot_acc, ss_acc, tt_acc, *, d_total, tile_d):
    k = pl.program_id(1)
    nk = pl.num_programs(1)

    @pl.when(k == 0)
    def _():
        dot_acc[...] = jnp.zeros_like(dot_acc)
        ss_acc[...] = jnp.zeros_like(ss_acc)
        tt_acc[...] = jnp.zeros_like(tt_acc)

    def read_chunk(start, width):
        s = s_ref[:, pl.ds(start, width)].astype(jnp.float32)
        t = t_ref[:, pl.ds(start, width)].astype(jnp.float32)
        return s, t

    def accumulate(ncols):
        # Deferred reduction: elementwise-accumulate 128-lane chunks (VPU only)
        # into (tile_b, 128) partials; the cross-lane reduce happens once, in
        # the finalize step.
        nf, rem = ncols // 128, ncols % 128
        if nf > 0:
            s0, t0 = read_chunk(0, 128)
            carry = (s0 * t0, s0 * s0, t0 * t0)
            if nf <= _UNROLL_MAX:
                for c in range(1, nf):
                    sc, tc = read_chunk(c * 128, 128)
                    dps, sss, tts = carry
                    carry = (dps + sc * tc, sss + sc * sc, tts + tc * tc)
            else:
                def body(c, carry):
                    dps, sss, tts = carry
                    off = pl.multiple_of(c * 128, 128)
                    sc, tc = read_chunk(off, 128)
                    return (dps + sc * tc, sss + sc * sc, tts + tc * tc)
                carry = lax.fori_loop(1, nf, body, carry)
            dps, sss, tts = carry
            dot_acc[...] += dps
            ss_acc[...] += sss
            tt_acc[...] += tts
        if rem:
            # Short (<128 lane) static-width remainder: fold into lane 0.
            sr, tr = read_chunk(nf * 128, rem)
            dot_acc[:, 0:1] += jnp.sum(sr * tr, axis=-1, keepdims=True)
            ss_acc[:, 0:1] += jnp.sum(sr * sr, axis=-1, keepdims=True)
            tt_acc[:, 0:1] += jnp.sum(tr * tr, axis=-1, keepdims=True)

    tail = d_total % tile_d
    if tail == 0:
        accumulate(tile_d)
    else:
        # Only the last reduction step has a partially valid block; handle it
        # with static partial-width reads (zero masking overhead elsewhere).
        @pl.when(k < nk - 1)
        def _():
            accumulate(tile_d)

        @pl.when(k == nk - 1)
        def _():
            accumulate(tail)

    @pl.when(k == nk - 1)
    def _():
        # Matches ATen cosine_embedding_loss: EPSILON = 1e-12 added to the
        # squared magnitudes before the sqrt; target==+1 -> 1-cos,
        # target==-1 -> clamp(cos, 0) (margin=0), anything else -> 0.
        eps = jnp.float32(1e-12)
        dot = jnp.sum(dot_acc[...], axis=-1, keepdims=True)
        ss = jnp.sum(ss_acc[...], axis=-1, keepdims=True)
        tt = jnp.sum(tt_acc[...], axis=-1, keepdims=True)
        cos = dot / jnp.sqrt((ss + eps) * (tt + eps))
        tgt = dum_ref[...]
        pos = 1.0 - cos
        neg = jnp.maximum(cos, 0.0)
        zero = jnp.zeros_like(cos)
        # NOTE: rows past B in a partial last batch tile compute on whatever
        # the DMA left in the buffer; those rows are never written back and the
        # wrapper's mean only covers B rows -- do NOT sum inside the kernel.
        out_ref[...] = jnp.where(tgt == 1.0, pos,
                                 jnp.where(tgt == -1.0, neg, zero))


def _round_up(x, m):
    return (x + m - 1) // m * m


def _choose_tiles(B, D, itemsize):
    # Batch tile: full B when tiny; otherwise a multiple of 8 capped at 32
    # (keeps the three f32 partial-sum carries at <= 12 vregs) and small
    # enough that grid_b >= 2 (pipelining + both v7x TensorCores).
    if B <= 8:
        tile_b = B
    else:
        tile_b = min(32, _round_up(pl.cdiv(B, 2), 8))
    bp = _round_up(tile_b, 8)          # sublane-padded rows resident in VMEM

    # Feature tile: lane-dense, as big as a ~24 MiB budget for the
    # 2 inputs x 2 pipeline buffers allows, capped at 8192 lanes for f32
    # (16384 for narrower dtypes) so per-input blocks stay ~1 MiB.
    lane_cap = 8192 if itemsize >= 4 else 16384
    budget = 24 * 1024 * 1024
    max_td = budget // (4 * bp * itemsize)
    max_td = max(512, min(lane_cap, (max_td // 128) * 128))

    if D <= max_td:
        tile_d = D                     # whole feature dim in one block
    else:
        tile_d = min(max_td, (D // 128) * 128)
    return tile_b, bp, tile_d


def cosine_embedding_loss(fm_s, fm_t, dum):
    """Equivalent of F.cosine_embedding_loss(fm_s.view(B,-1), fm_t.view(B,-1), dum)."""
    B = fm_s.shape[0]
    s = fm_s.reshape(B, -1)            # no cast, no pad: native dtype to the kernel
    t = fm_t.reshape(B, -1)
    D = s.shape[1]
    itemsize = max(jnp.dtype(s.dtype).itemsize, jnp.dtype(t.dtype).itemsize)

    tile_b, bp, tile_d = _choose_tiles(B, D, itemsize)
    grid_b = pl.cdiv(B, tile_b)
    grid_k = pl.cdiv(D, tile_d)

    # Guarantee >=2 grid steps when a single block is big enough that an
    # exposed (un-overlapped) input DMA would dominate the wall clock.
    if (grid_b == 1 and grid_k == 1 and D >= 256
            and bp * tile_d * itemsize >= (512 << 10)):
        tile_d = _round_up(pl.cdiv(D, 2), 128)
        grid_k = pl.cdiv(D, tile_d)

    dum2 = dum.reshape(B, 1).astype(jnp.float32)   # B elements: negligible

    # Scoped-VMEM limit: 2 inputs x 2 pipeline buffers x padded block + the
    # three f32 accumulators + small out/dum blocks, plus headroom.
    # Floor 32 MiB (above v5e's 16 MiB default), cap 48 MiB (leaves room for
    # Mosaic internal scratch on v7x's 64 MiB physical VMEM per core).
    blk_bytes = bp * tile_d * itemsize
    vmem_needed = 4 * blk_bytes + 3 * bp * 128 * 4 + 16 * bp * 4
    vmem_limit = int(min(48 * 1024 * 1024,
                         max(vmem_needed + (4 << 20), 32 * 1024 * 1024)))

    kernel = functools.partial(_cos_loss_kernel, d_total=D, tile_d=tile_d)

    # TODO(synk): for B <= 8 with very long features, additionally split the
    # reduction across a leading parallel axis of size 2 (two partial
    # accumulator outputs combined in glue) so both v7x TensorCores stream HBM.
    per_row = pl.pallas_call(
        kernel,
        out_shape=jax.ShapeDtypeStruct((B, 1), jnp.float32),
        grid_spec=pltpu.PrefetchScalarGridSpec(
            num_scalar_prefetch=0,
            grid=(grid_b, grid_k),
            in_specs=[
                pl.BlockSpec((tile_b, tile_d), lambda b, k: (b, k)),
                pl.BlockSpec((tile_b, tile_d), lambda b, k: (b, k)),
                pl.BlockSpec((tile_b, 1), lambda b, k: (b, 0)),
            ],
            out_specs=pl.BlockSpec((tile_b, 1), lambda b, k: (b, 0)),
            scratch_shapes=[
                pltpu.VMEM((tile_b, 128), jnp.float32),
                pltpu.VMEM((tile_b, 128), jnp.float32),
                pltpu.VMEM((tile_b, 128), jnp.float32),
            ],
        ),
        compiler_params=pltpu.CompilerParams(
            dimension_semantics=("parallel", "arbitrary"),
            vmem_limit_bytes=vmem_limit,
        ),
    )(s, t, dum2)

    # reduction='mean' over the batch (tiny; stays in JAX glue).
    return jnp.mean(per_row)


if __name__ == "__main__":
    key = jax.random.PRNGKey(0)
    k1, k2 = jax.random.split(key)

    B, C, H, W = 2, 4, 16, 16
    fm_s = jax.random.normal(k1, (B, C, H, W), dtype=jnp.float32)
    fm_t = jax.random.normal(k2, (B, C, H, W), dtype=jnp.float32)
    dum = jnp.array([1.0, -1.0], dtype=jnp.float32)  # targets in {+1, -1}

    loss = cosine_embedding_loss(fm_s, fm_t, dum)
    jax.block_until_ready(loss)

    # Pure-JAX reference check (same math as F.cosine_embedding_loss).
    s = fm_s.reshape(B, -1).astype(jnp.float32)
    t = fm_t.reshape(B, -1).astype(jnp.float32)
    eps = 1e-12
    cos = jnp.sum(s * t, -1) / jnp.sqrt(
        (jnp.sum(s * s, -1) + eps) * (jnp.sum(t * t, -1) + eps)
    )
    ref = jnp.mean(jnp.where(dum == 1.0, 1.0 - cos,
                             jnp.where(dum == -1.0, jnp.maximum(cos, 0.0), 0.0)))
    assert jnp.allclose(loss, ref, atol=1e-5, rtol=1e-5), (loss, ref)

    print("KERNEL_OK")
</pallas_src>

<mosaic_0001>
module attributes {stable_mosaic.version = 11 : i64} {
  func.func @_cos_loss_kernel(%arg0: i32, %arg1: i32, %arg2: memref<2x1024xf32, #tpu.memory_space<vmem>>, %arg3: memref<2x1024xf32, #tpu.memory_space<vmem>>, %arg4: memref<2x1xf32, #tpu.memory_space<vmem>>, %arg5: memref<2x1xf32, #tpu.memory_space<vmem>>, %arg6: memref<2x128xf32, #tpu.memory_space<vmem>>, %arg7: memref<2x128xf32, #tpu.memory_space<vmem>>, %arg8: memref<2x128xf32, #tpu.memory_space<vmem>>) attributes {dimension_semantics = [#tpu.dimension_semantics<parallel>, #tpu.dimension_semantics<arbitrary>], iteration_bounds = array<i64: 1, 1>, scalar_prefetch = 0 : i64, scratch_operands = 3 : i64, tpu.core_type = #tpu.core_type<tc>, window_params = [{transform_indices = @transform_0, window_bounds = array<i64: 2, 1024>}, {transform_indices = @transform_1, window_bounds = array<i64: 2, 1024>}, {transform_indices = @transform_2, window_bounds = array<i64: 2, 1>}, {transform_indices = @transform_3, window_bounds = array<i64: 2, 1>}]} {
    %c0_i32 = arith.constant 0 : i32
    %0 = arith.cmpi eq, %arg1, %c0_i32 : i32
    %1 = arith.extui %0 : i1 to i32
    %c0_i32_0 = arith.constant 0 : i32
    %2 = arith.cmpi ne, %1, %c0_i32_0 : i32
    scf.if %2 {
      %cst = arith.constant 0.000000e+00 : f32
      %76 = vector.broadcast %cst : f32 to vector<2x128xf32>
      %c0_39 = arith.constant 0 : index
      %c0_40 = arith.constant 0 : index
      %77 = vector.load %arg6[%c0_39, %c0_40] : memref<2x128xf32, #tpu.memory_space<vmem>>, vector<2x128xf32>
      tpu.vector_store %arg6[%c0_39, %c0_40], %76 {strides = array<i32>} : memref<2x128xf32, #tpu.memory_space<vmem>>, vector<2x128xf32>,
      %cst_41 = arith.constant 0.000000e+00 : f32
      %78 = vector.broadcast %cst_41 : f32 to vector<2x128xf32>
      %c0_42 = arith.constant 0 : index
      %c0_43 = arith.constant 0 : index
      %79 = vector.load %arg7[%c0_42, %c0_43] : memref<2x128xf32, #tpu.memory_space<vmem>>, vector<2x128xf32>
      tpu.vector_store %arg7[%c0_42, %c0_43], %78 {strides = array<i32>} : memref<2x128xf32, #tpu.memory_space<vmem>>, vector<2x128xf32>,
      %cst_44 = arith.constant 0.000000e+00 : f32
      %80 = vector.broadcast %cst_44 : f32 to vector<2x128xf32>
      %c0_45 = arith.constant 0 : index
      %c0_46 = arith.constant 0 : index
      %81 = vector.load %arg8[%c0_45, %c0_46] : memref<2x128xf32, #tpu.memory_space<vmem>>, vector<2x128xf32>
      tpu.vector_store %arg8[%c0_45, %c0_46], %80 {strides = array<i32>} : memref<2x128xf32, #tpu.memory_space<vmem>>, vector<2x128xf32>,
    } else {
    }
    %c0 = arith.constant 0 : index
    %c0_1 = arith.constant 0 : index
    %3 = vector.load %arg2[%c0, %c0_1] : memref<2x1024xf32, #tpu.memory_space<vmem>>, vector<2x128xf32>
    %c0_2 = arith.constant 0 : index
    %c0_3 = arith.constant 0 : index
    %4 = vector.load %arg3[%c0_2, %c0_3] : memref<2x1024xf32, #tpu.memory_space<vmem>>, vector<2x128xf32>
    %5 = arith.mulf %3, %4 : vector<2x128xf32>
    %6 = arith.mulf %3, %3 : vector<2x128xf32>
    %7 = arith.mulf %4, %4 : vector<2x128xf32>
    %c0_4 = arith.constant 0 : index
    %c128 = arith.constant 128 : index
    %8 = vector.load %arg2[%c0_4, %c128] : memref<2x1024xf32, #tpu.memory_space<vmem>>, vector<2x128xf32>
    %c0_5 = arith.constant 0 : index
    %c128_6 = arith.constant 128 : index
    %9 = vector.load %arg3[%c0_5, %c128_6] : memref<2x1024xf32, #tpu.memory_space<vmem>>, vector<2x128xf32>
    %10 = arith.mulf %8, %9 : vector<2x128xf32>
    %11 = arith.addf %5, %10 : vector<2x128xf32>
    %12 = arith.mulf %8, %8 : vector<2x128xf32>
    %13 = arith.addf %6, %12 : vector<2x128xf32>
    %14 = arith.mulf %9, %9 : vector<2x128xf32>
    %15 = arith.addf %7, %14 : vector<2x128xf32>
    %c0_7 = arith.constant 0 : index
    %c256 = arith.constant 256 : index
    %16 = vector.load %arg2[%c0_7, %c256] : memref<2x1024xf32, #tpu.memory_space<vmem>>, vector<2x128xf32>
    %c0_8 = arith.constant 0 : index
    %c256_9 = arith.constant 256 : index
    %17 = vector.load %arg3[%c0_8, %c256_9] : memref<2x1024xf32, #tpu.memory_space<vmem>>, vector<2x128xf32>
    %18 = arith.mulf %16, %17 : vector<2x128xf32>
    %19 = arith.addf %11, %18 : vector<2x128xf32>
    %20 = arith.mulf %16, %16 : vector<2x128xf32>
    %21 = arith.addf %13, %20 : vector<2x128xf32>
    %22 = arith.mulf %17, %17 : vector<2x128xf32>
    %23 = arith.addf %15, %22 : vector<2x128xf32>
    %c0_10 = arith.constant 0 : index
    %c384 = arith.constant 384 : index
    %24 = vector.load %arg2[%c0_10, %c384] : memref<2x1024xf32, #tpu.memory_space<vmem>>, vector<2x128xf32>
    %c0_11 = arith.constant 0 : index
    %c384_12 = arith.constant 384 : index
    %25 = vector.load %arg3[%c0_11, %c384_12] : memref<2x1024xf32, #tpu.memory_space<vmem>>, vector<2x128xf32>
    %26 = arith.mulf %24, %25 : vector<2x128xf32>
    %27 = arith.addf %19, %26 : vector<2x128xf32>
    %28 = arith.mulf %24, %24 : vector<2x128xf32>
    %29 = arith.addf %21, %28 : vector<2x128xf32>
    %30 = arith.mulf %25, %25 : vector<2x128xf32>
    %31 = arith.addf %23, %30 : vector<2x128xf32>
    %c0_13 = arith.constant 0 : index
    %c512 = arith.constant 512 : index
    %32 = vector.load %arg2[%c0_13, %c512] : memref<2x1024xf32, #tpu.memory_space<vmem>>, vector<2x128xf32>
    %c0_14 = arith.constant 0 : index
    %c512_15 = arith.constant 512 : index
    %33 = vector.load %arg3[%c0_14, %c512_15] : memref<2x1024xf32, #tpu.memory_space<vmem>>, vector<2x128xf32>
    %34 = arith.mulf %32, %33 : vector<2x128xf32>
    %35 = arith.addf %27, %34 : vector<2x128xf32>
    %36 = arith.mulf %32, %32 : vector<2x128xf32>
    %37 = arith.addf %29, %36 : vector<2x128xf32>
    %38 = arith.mulf %33, %33 : vector<2x128xf32>
    %39 = arith.addf %31, %38 : vector<2x128xf32>
    %c0_16 = arith.constant 0 : index
    %c640 = arith.constant 640 : index
    %40 = vector.load %arg2[%c0_16, %c640] : memref<2x1024xf32, #tpu.memory_space<vmem>>, vector<2x128xf32>
    %c0_17 = arith.constant 0 : index
    %c640_18 = arith.constant 640 : index
    %41 = vector.load %arg3[%c0_17, %c640_18] : memref<2x1024xf32, #tpu.memory_space<vmem>>, vector<2x128xf32>
    %42 = arith.mulf %40, %41 : vector<2x128xf32>
    %43 = arith.addf %35, %42 : vector<2x128xf32>
    %44 = arith.mulf %40, %40 : vector<2x128xf32>
    %45 = arith.addf %37, %44 : vector<2x128xf32>
    %46 = arith.mulf %41, %41 : vector<2x128xf32>
    %47 = arith.addf %39, %46 : vector<2x128xf32>
    %c0_19 = arith.constant 0 : index
    %c768 = arith.constant 768 : index
    %48 = vector.load %arg2[%c0_19, %c768] : memref<2x1024xf32, #tpu.memory_space<vmem>>, vector<2x128xf32>
    %c0_20 = arith.constant 0 : index
    %c768_21 = arith.constant 768 : index
    %49 = vector.load %arg3[%c0_20, %c768_21] : memref<2x1024xf32, #tpu.memory_space<vmem>>, vector<2x128xf32>
    %50 = arith.mulf %48, %49 : vector<2x128xf32>
    %51 = arith.addf %43, %50 : vector<2x128xf32>
    %52 = arith.mulf %48, %48 : vector<2x128xf32>
    %53 = arith.addf %45, %52 : vector<2x128xf32>
    %54 = arith.mulf %49, %49 : vector<2x128xf32>
    %55 = arith.addf %47, %54 : vector<2x128xf32>
    %c0_22 = arith.constant 0 : index
    %c896 = arith.constant 896 : index
    %56 = vector.load %arg2[%c0_22, %c896] : memref<2x1024xf32, #tpu.memory_space<vmem>>, vector<2x128xf32>
    %c0_23 = arith.constant 0 : index
    %c896_24 = arith.constant 896 : index
    %57 = vector.load %arg3[%c0_23, %c896_24] : memref<2x1024xf32, #tpu.memory_space<vmem>>, vector<2x128xf32>
    %58 = arith.mulf %56, %57 : vector<2x128xf32>
    %59 = arith.addf %51, %58 : vector<2x128xf32>
    %60 = arith.mulf %56, %56 : vector<2x128xf32>
    %61 = arith.addf %53, %60 : vector<2x128xf32>
    %62 = arith.mulf %57, %57 : vector<2x128xf32>
    %63 = arith.addf %55, %62 : vector<2x128xf32>
    %c0_25 = arith.constant 0 : index
    %c0_26 = arith.constant 0 : index
    %64 = vector.load %arg6[%c0_25, %c0_26] : memref<2x128xf32, #tpu.memory_space<vmem>>, vector<2x128xf32>
    %65 = arith.addf %64, %59 : vector<2x128xf32>
    %c0_27 = arith.constant 0 : index
    %c0_28 = arith.constant 0 : index
    %66 = vector.load %arg6[%c0_27, %c0_28] : memref<2x128xf32, #tpu.memory_space<vmem>>, vector<2x128xf32>
    tpu.vector_store %arg6[%c0_27, %c0_28], %65 {strides = array<i32>} : memref<2x128xf32, #tpu.memory_space<vmem>>, vector<2x128xf32>,
    %c0_29 = arith.constant 0 : index
    %c0_30 = arith.constant 0 : index
    %67 = vector.load %arg7[%c0_29, %c0_30] : memref<2x128xf32, #tpu.memory_space<vmem>>, vector<2x128xf32>
    %68 = arith.addf %67, %61 : vector<2x128xf32>
    %c0_31 = arith.constant 0 : index
    %c0_32 = arith.constant 0 : index
    %69 = vector.load %arg7[%c0_31, %c0_32] : memref<2x128xf32, #tpu.memory_space<vmem>>, vector<2x128xf32>
    tpu.vector_store %arg7[%c0_31, %c0_32], %68 {strides = array<i32>} : memref<2x128xf32, #tpu.memory_space<vmem>>, vector<2x128xf32>,
    %c0_33 = arith.constant 0 : index
    %c0_34 = arith.constant 0 : index
    %70 = vector.load %arg8[%c0_33, %c0_34] : memref<2x128xf32, #tpu.memory_space<vmem>>, vector<2x128xf32>
    %71 = arith.addf %70, %63 : vector<2x128xf32>
    %c0_35 = arith.constant 0 : index
    %c0_36 = arith.constant 0 : index
    %72 = vector.load %arg8[%c0_35, %c0_36] : memref<2x128xf32, #tpu.memory_space<vmem>>, vector<2x128xf32>
    tpu.vector_store %arg8[%c0_35, %c0_36], %71 {strides = array<i32>} : memref<2x128xf32, #tpu.memory_space<vmem>>, vector<2x128xf32>,
    %c0_i32_37 = arith.constant 0 : i32
    %73 = arith.cmpi eq, %arg1, %c0_i32_37 : i32
    %74 = arith.extui %73 : i1 to i32
    %c0_i32_38 = arith.constant 0 : i32
    %75 = arith.cmpi ne, %74, %c0_i32_38 : i32
    scf.if %75 {
      %c0_39 = arith.constant 0 : index
      %c0_40 = arith.constant 0 : index
      %76 = vector.load %arg6[%c0_39, %c0_40] : memref<2x128xf32, #tpu.memory_space<vmem>>, vector<2x128xf32>
      %cst = arith.constant dense<0.000000e+00> : vector<2xf32>
      %77 = vector.multi_reduction <add>, %76, %cst [1] : vector<2x128xf32> to vector<2xf32>
      %78 = vector.shape_cast %77 : vector<2xf32> to vector<2x1xf32>
      %c0_41 = arith.constant 0 : index
      %c0_42 = arith.constant 0 : index
      %79 = vector.load %arg7[%c0_41, %c0_42] : memref<2x128xf32, #tpu.memory_space<vmem>>, vector<2x128xf32>
      %cst_43 = arith.constant dense<0.000000e+00> : vector<2xf32>
      %80 = vector.multi_reduction <add>, %79, %cst_43 [1] : vector<2x128xf32> to vector<2xf32>
      %81 = vector.shape_cast %80 : vector<2xf32> to vector<2x1xf32>
      %c0_44 = arith.constant 0 : index
      %c0_45 = arith.constant 0 : index
      %82 = vector.load %arg8[%c0_44, %c0_45] : memref<2x128xf32, #tpu.memory_space<vmem>>, vector<2x128xf32>
      %cst_46 = arith.constant dense<0.000000e+00> : vector<2xf32>
      %83 = vector.multi_reduction <add>, %82, %cst_46 [1] : vector<2x128xf32> to vector<2xf32>
      %84 = vector.shape_cast %83 : vector<2xf32> to vector<2x1xf32>
      %cst_47 = arith.constant 9.99999996E-13 : f32
      %85 = vector.broadcast %cst_47 : f32 to vector<2x1xf32>
      %86 = arith.addf %81, %85 : vector<2x1xf32>
      %cst_48 = arith.constant 9.99999996E-13 : f32
      %87 = vector.broadcast %cst_48 : f32 to vector<2x1xf32>
      %88 = arith.addf %84, %87 : vector<2x1xf32>
      %89 = arith.mulf %86, %88 : vector<2x1xf32>
      %90 = math.sqrt %89 : vector<2x1xf32>
      %91 = arith.divf %78, %90 : vector<2x1xf32>
      %c0_49 = arith.constant 0 : index
      %c0_50 = arith.constant 0 : index
      %92 = vector.load %arg4[%c0_49, %c0_50] : memref<2x1xf32, #tpu.memory_space<vmem>>, vector<2x1xf32>
      %cst_51 = arith.constant 1.000000e+00 : f32
      %93 = vector.broadcast %cst_51 : f32 to vector<2x1xf32>
      %94 = arith.subf %93, %91 : vector<2x1xf32>
      %cst_52 = arith.constant 0.000000e+00 : f32
      %95 = vector.broadcast %cst_52 : f32 to vector<2x1xf32>
      %96 = arith.maximumf %91, %95 : vector<2x1xf32>
      %cst_53 = arith.constant 0.000000e+00 : f32
      %97 = vector.broadcast %cst_53 : f32 to vector<2x1xf32>
      %cst_54 = arith.constant 1.000000e+00 : f32
      %98 = vector.broadcast %cst_54 : f32 to vector<2x1xf32>
      %99 = arith.cmpf oeq, %92, %98 : vector<2x1xf32>
      %cst_55 = arith.constant -1.000000e+00 : f32
      %100 = vector.broadcast %cst_55 : f32 to vector<2x1xf32>
      %101 = arith.cmpf oeq, %92, %100 : vector<2x1xf32>
      %102 = arith.select %101, %96, %97 : vector<2x1xi1>, vector<2x1xf32>
      %103 = arith.select %99, %94, %102 : vector<2x1xi1>, vector<2x1xf32>
      %c0_56 = arith.constant 0 : index
      %c0_57 = arith.constant 0 : index
      %104 = vector.load %arg5[%c0_56, %c0_57] : memref<2x1xf32, #tpu.memory_space<vmem>>, vector<2x1xf32>
      tpu.vector_store %arg5[%c0_56, %c0_57], %103 {strides = array<i32>} : memref<2x1xf32, #tpu.memory_space<vmem>>, vector<2x1xf32>,
    } else {
    }
    return
  }
  func.func @transform_0(%arg0: i32, %arg1: i32) -> (i32, i32) {
    %c0_i32 = arith.constant 0 : i32
    return %arg0, %arg1 : i32, i32
  }
  func.func @transform_1(%arg0: i32, %arg1: i32) -> (i32, i32) {
    %c0_i32 = arith.constant 0 : i32
    return %arg0, %arg1 : i32, i32
  }
  func.func @transform_2(%arg0: i32, %arg1: i32) -> (i32, i32) {
    %c0_i32 = arith.constant 0 : i32
    %c0_i32_0 = arith.constant 0 : i32
    return %arg0, %c0_i32 : i32, i32
  }
  func.func @transform_3(%arg0: i32, %arg1: i32) -> (i32, i32) {
    %c0_i32 = arith.constant 0 : i32
    %c0_i32_0 = arith.constant 0 : i32
    return %arg0, %c0_i32 : i32, i32
  }
}

</mosaic_0001>

<llo_original>
// kernel: tpu_custom_call.1
$region0: #{tpu_custom_call.1}
  #allocation0 [shape = 'u32[]', space=smem, size = 0x4, offset = 0x4, fixed_abs, tag = 'smem constant byte address 0x4 - core index']
  #allocation1 [shape = 'u32[144,128]{1,0:T(1,128)}', space=vmem, size = 0x12000, scoped, tag = 'internal scratch']
  #allocation2 [shape = 'f32[2,128]{1,0:T(2,128)}', space=vmem, size = 0x400, scoped, tag = 'scratch operand']
  #allocation3 [shape = 'f32[2,128]{1,0:T(2,128)}', space=vmem, size = 0x400, scoped, tag = 'scratch operand']
  #allocation4 [shape = 'f32[2,128]{1,0:T(2,128)}', space=vmem, size = 0x400, scoped, tag = 'scratch operand']
  %s0 = inlined_call_operand.hbm [shape: f32[2,1024], index: 0, kind: input, shape index: {}]
  %s1 = inlined_call_operand.hbm [shape: f32[2,1024], index: 1, kind: input, shape index: {}]
  %s2 = inlined_call_operand.vmem [shape: f32[2,1], index: 2, kind: input, shape index: {}]
  %s3 = inlined_call_operand.vmem [shape: f32[2,1], index: 3, kind: output, shape index: {}]
  %s4 = sld [smem:[#allocation0]]
  $region38: #{tpu_custom_call.1} parent=0
    _
  %s6 = ssub.s32 1, %s4
  %s7 = scalar_select 0, %s6, %s4
  $region1: #{tpu_custom_call.1} parent=0
    #allocation5 [shape = 'u8[8192]{0}', space=vmem, size = 0x2000, scoped, tag = 'input window, operand 0, single buffered']
    #allocation6 [shape = 's32[1]{0}', space=sflag, size = 0x4, scoped, tag = 'scoped memory for tpu_custom_call.1']
    #allocation7 [shape = 'u8[8192]{0}', space=vmem, size = 0x2000, scoped, tag = 'input window, operand 1, single buffered']
    #allocation8 [shape = 's32[1]{0}', space=sflag, size = 0x4, scoped, tag = 'scoped memory for tpu_custom_call.1']
    %8 = vsyncpa [#allocation6], 0
    %9 = vsyncpa [#allocation8], 0
    // Predicated region
    $region2: #{tpu_custom_call.1} parent=1 // pred_check
      _
    $region3: #{tpu_custom_call.1} parent=1 // pred_check_branch
      %11 = sbr.rel (0) target = $region5
    $region4: #{tpu_custom_call.1} parent=1 // pred_region
      %s13 = ssub.s32 256, 256
      %14 = vsyncadd [#allocation6], %s13
      %s16 = sshll.u32 [#allocation5], 4
      %s17 = int_to_ptr.vmem [resolvable:$true] %s16
      %19 = dma.hbm_to_vmem [thread:$0]  %s0, 256, %s17, [#allocation6]
    $region5: #{tpu_custom_call.1} parent=1 // pred_fallthru
      _
    // Predicated region
    $region6: #{tpu_custom_call.1} parent=1 // pred_check
      _
    $region7: #{tpu_custom_call.1} parent=1 // pred_check_branch
      %21 = sbr.rel (0) target = $region9
    $region8: #{tpu_custom_call.1} parent=1 // pred_region
      %s23 = ssub.s32 256, 256
      %24 = vsyncadd [#allocation8], %s23
      %s26 = sshll.u32 [#allocation7], 4
      %s27 = int_to_ptr.vmem [resolvable:$true] %s26
      %29 = dma.hbm_to_vmem [thread:$0]  %s1, 256, %s27, [#allocation8]
    $region9: #{tpu_custom_call.1} parent=1 // pred_fallthru
      _
    // Predicated region
    $region10: #{tpu_custom_call.1} parent=1 // pred_check
      _
    $region11: #{tpu_custom_call.1} parent=1 // pred_check_branch
      %31 = sbr.rel (0) target = $region13
    $region12: #{tpu_custom_call.1} parent=1 // pred_region
      _
    $region13: #{tpu_custom_call.1} parent=1 // pred_fallthru
      _
    // Predicated region
    $region14: #{tpu_custom_call.1} parent=1 // pred_check
      _
    $region15: #{tpu_custom_call.1} parent=1 // pred_check_branch
      %33 = sbr.rel (0) target = $region17
    $region16: #{tpu_custom_call.1} parent=1 // pred_region
      %34 = dma.done [#allocation6], 256
    $region17: #{tpu_custom_call.1} parent=1 // pred_fallthru
      _
    // Predicated region
    $region18: #{tpu_custom_call.1} parent=1 // pred_check
      _
    $region19: #{tpu_custom_call.1} parent=1 // pred_check_branch
      %36 = sbr.rel (0) target = $region21
    $region20: #{tpu_custom_call.1} parent=1 // pred_region
      %37 = dma.done [#allocation8], 256
    $region21: #{tpu_custom_call.1} parent=1 // pred_fallthru
      _
    %p38 = scmp.eq.s32.totalorder 0, 0
    // Predicated region
    $region22: #{tpu_custom_call.1} parent=1 // pred_check
      %p39 = pneg %p38
    $region23: #{tpu_custom_call.1} parent=1 // pred_check_branch
      %41 = sbr.rel (%p39) target = $region25
    $region24: #{tpu_custom_call.1} parent=1 // pred_region
      %42 = vst [vmem:[#allocation2] sm:$0x3] 0.0
      %43 = vst [vmem:[#allocation3] sm:$0x3] 0.0
      %44 = vst [vmem:[#allocation4] sm:$0x3] 0.0
    $region25: #{tpu_custom_call.1} parent=1 // pred_fallthru
      _
    %v45 = vld [vmem:[#allocation5] sm:$0x3]
    %v46 = vld [vmem:[#allocation7] sm:$0x3]
    %v47 = vmul.f32 %v45, %v46
    %v48 = vmul.f32 %v45, %v45
    %v49 = vmul.f32 %v46, %v46
    %v50 = vld [vmem:[#allocation5 + $0x2] sm:$0x3]
    %v51 = vld [vmem:[#allocation7 + $0x2] sm:$0x3]
    %v52 = vmul.f32 %v50, %v51
    %v53 = vadd.f32 %v47, %v52
    %v54 = vmul.f32 %v50, %v50
    %v55 = vadd.f32 %v48, %v54
    %v56 = vmul.f32 %v51, %v51
    %v57 = vadd.f32 %v49, %v56
    %v58 = vld [vmem:[#allocation5 + $0x4] sm:$0x3]
    %v59 = vld [vmem:[#allocation7 + $0x4] sm:$0x3]
    %v60 = vmul.f32 %v58, %v59
    %v61 = vadd.f32 %v53, %v60
    %v62 = vmul.f32 %v58, %v58
    %v63 = vadd.f32 %v55, %v62
    %v64 = vmul.f32 %v59, %v59
    %v65 = vadd.f32 %v57, %v64
    %v66 = vld [vmem:[#allocation5 + $0x6] sm:$0x3]
    %v67 = vld [vmem:[#allocation7 + $0x6] sm:$0x3]
    %v68 = vmul.f32 %v66, %v67
    %v69 = vadd.f32 %v61, %v68
    %v70 = vmul.f32 %v66, %v66
    %v71 = vadd.f32 %v63, %v70
    %v72 = vmul.f32 %v67, %v67
    %v73 = vadd.f32 %v65, %v72
    %v74 = vld [vmem:[#allocation5 + $0x8] sm:$0x3]
    %v75 = vld [vmem:[#allocation7 + $0x8] sm:$0x3]
    %v76 = vmul.f32 %v74, %v75
    %v77 = vadd.f32 %v69, %v76
    %v78 = vmul.f32 %v74, %v74
    %v79 = vadd.f32 %v71, %v78
    %v80 = vmul.f32 %v75, %v75
    %v81 = vadd.f32 %v73, %v80
    %v82 = vld [vmem:[#allocation5 + $0xa] sm:$0x3]
    %v83 = vld [vmem:[#allocation7 + $0xa] sm:$0x3]
    %v84 = vmul.f32 %v82, %v83
    %v85 = vadd.f32 %v77, %v84
    %v86 = vmul.f32 %v82, %v82
    %v87 = vadd.f32 %v79, %v86
    %v88 = vmul.f32 %v83, %v83
    %v89 = vadd.f32 %v81, %v88
    %v90 = vld [vmem:[#allocation5 + $0xc] sm:$0x3]
    %v91 = vld [vmem:[#allocation7 + $0xc] sm:$0x3]
    %v92 = vmul.f32 %v90, %v91
    %v93 = vadd.f32 %v85, %v92
    %v94 = vmul.f32 %v90, %v90
    %v95 = vadd.f32 %v87, %v94
    %v96 = vmul.f32 %v91, %v91
    %v97 = vadd.f32 %v89, %v96
    %v98 = vld [vmem:[#allocation5 + $0xe] sm:$0x3]
    %v99 = vld [vmem:[#allocation7 + $0xe] sm:$0x3]
    %v100 = vmul.f32 %v98, %v99
    %v101 = vadd.f32 %v93, %v100
    %v102 = vmul.f32 %v98, %v98
    %v103 = vadd.f32 %v95, %v102
    %v104 = vmul.f32 %v99, %v99
    %v105 = vadd.f32 %v97, %v104
    %v106 = vld [vmem:[#allocation2] sm:$0x3]
    %v107 = vadd.f32 %v106, %v101
    %108 = vst [vmem:[#allocation2] sm:$0x3] %v107
    %v109 = vld [vmem:[#allocation3] sm:$0x3]
    %v110 = vadd.f32 %v109, %v103
    %111 = vst [vmem:[#allocation3] sm:$0x3] %v110
    %v112 = vld [vmem:[#allocation4] sm:$0x3]
    %v113 = vadd.f32 %v112, %v105
    %114 = vst [vmem:[#allocation4] sm:$0x3] %v113
    // Predicated region
    $region26: #{tpu_custom_call.1} parent=1 // pred_check
      %p115 = pneg %p38
    $region27: #{tpu_custom_call.1} parent=1 // pred_check_branch
      %117 = sbr.rel (%p115) target = $region29
    $region28: #{tpu_custom_call.1} parent=1 // pred_region
      %v118 = vld [vmem:[#allocation2] sm:$0x3]
      %vm119 = vcmask 1041408
      %v120 = vsel %vm119, %v118, 0.0
      %121 = vadd.xlane.f32.xlu0 %v120
      %v122 = vpop.xlane.xlu0 %121
      %v123 = vld [vmem:[#allocation3] sm:$0x3]
      %v124 = vsel %vm119, %v123, 0.0
      %125 = vadd.xlane.f32.xlu0 %v124
      %v126 = vpop.xlane.xlu0 %125
      %v127 = vld [vmem:[#allocation4] sm:$0x3]
      %v128 = vsel %vm119, %v127, 0.0
      %129 = vadd.xlane.f32.xlu0 %v128
      %v130 = vpop.xlane.xlu0 %129
      %v131 = vadd.f32 %v126, 1e-12
      %v132 = vadd.f32 %v130, 1e-12
      %v133 = vmul.f32 %v131, %v132
      %v134 = vrsqrt.pop %v133
      %v135 = vmul.f32 %v133, %v134
      %vm136 = vcmp.eq.f32.partialorder %v133, inf
      %v137 = vsel %vm136, %v133, %v135
      %vm138 = vcmp.eq.f32.partialorder %v133, 0.0
      %v139 = vand.u32 %v133, 2147483648
      %v140 = vsel %vm138, %v139, %v137
      %v141 = vrcp.pop %v140
      %v142 = vmul.f32 %v122, %v141
      %v143 = vld [vmem:[%s2] sm:$0x3]
      %v144 = vsub.f32 1.0, %v142
      %v145 = vmax.f32 %v142, 0.0
      %vm146 = vcmp.eq.f32.partialorder %v143, 1.0
      %vm147 = vcmp.eq.f32.partialorder %v143, -1.0
      %v148 = vsel %vm147, %v145, 0.0
      %v149 = vsel %vm146, %v144, %v148
      %vm150 = vcmask 1024
      %151 = vst.msk [vmem:[%s3] sm:$0x3] %vm150, %v149
    $region29: #{tpu_custom_call.1} parent=1 // pred_fallthru
      _
    // Predicated region
    $region30: #{tpu_custom_call.1} parent=1 // pred_check
      _
    $region31: #{tpu_custom_call.1} parent=1 // pred_check_branch
      %153 = sbr.rel (0) target = $region33
    $region32: #{tpu_custom_call.1} parent=1 // pred_region
      _
    $region33: #{tpu_custom_call.1} parent=1 // pred_fallthru
      _
    // Predicated region
    $region34: #{tpu_custom_call.1} parent=1 // pred_check
      _
    $region35: #{tpu_custom_call.1} parent=1 // pred_check_branch
      %155 = sbr.rel (0) target = $region37
    $region36: #{tpu_custom_call.1} parent=1 // pred_region
      _
    $region37: #{tpu_custom_call.1} parent=1 // pred_fallthru
      _
    %156 = vsyncpa [#allocation6], 1
    %157 = vsyncpa [#allocation8], 1

</llo_original>
